<compile_context>
chip_gen: v7x
topology: tpu7x:2x2x1
jax: 0.10.0
libtpu: 0.0.40
codegen_flags: <defaults>
</compile_context>

<pallas_src>
import jax
import jax.numpy as jnp
from jax.experimental import pallas as pl
from jax.experimental.pallas import tpu as pltpu

INPUT_DIM = 1568          # 2 * 28 * 28, as in the reference script
NUM_CLASSES = 10


def _round_up(x, m):
    return ((x + m - 1) // m) * m


def _linear_kernel(x_ref, w_ref, b_ref, o_ref):
    # x_ref: (TILE_B, K)  w_ref: (K, N_pad)  b_ref: (1, N_pad)  o_ref: (TILE_B, N_pad)
    acc = jnp.dot(x_ref[...], w_ref[...], preferred_element_type=jnp.float32)
    o_ref[...] = (acc + b_ref[...]).astype(o_ref.dtype)


def linear_classifier_forward(x, w_t, b, *, tile_b=2048):
    """x: any shape with leading batch dim; w_t: (input_dim, num_classes); b: (num_classes,)."""
    B = x.shape[0]
    x_flat = x.reshape(B, -1)                      # x.view(x.size(0), -1)
    K, N = w_t.shape
    assert x_flat.shape[1] == K

    # Lane-dense padding of the (tiny) output dim only; x stays unpadded.
    N_pad = _round_up(N, 128)                      # 10 -> 128

    # Batch tile: multiple of 8 (sublane).  Shrink for small batches so the grid has
    # >=4 tiles (feeds both v7x TensorCores and gives each core >=2 pipeline steps);
    # cap at tile_b so double-buffered x tiles fit the 48 MiB scoped-VMEM budget.
    tile_b = max(8, min(tile_b, _round_up(pl.cdiv(B, 4), 8)))
    grid_b = pl.cdiv(B, tile_b)                    # ragged last block is clipped by Pallas

    # Pad weight / bias in N only (one-time ~0.8 MiB; VMEM-resident across the grid).
    w_p = jnp.pad(w_t, ((0, 0), (0, N_pad - N))) if N_pad != N else w_t
    b_p = b.reshape(1, N)
    if N_pad != N:
        b_p = jnp.pad(b_p, ((0, 0), (0, N_pad - N)))

    itemsize = jnp.dtype(x_flat.dtype).itemsize

    out = pl.pallas_call(
        _linear_kernel,
        out_shape=jax.ShapeDtypeStruct((B, N_pad), x_flat.dtype),
        grid_spec=pltpu.PrefetchScalarGridSpec(
            num_scalar_prefetch=0,
            grid=(grid_b,),
            in_specs=[
                # x: one batch tile per grid step, streamed / double-buffered; K is the
                # full array extent so no K padding or masking of the DMA is needed.
                pl.BlockSpec((tile_b, K), lambda i: (i, 0)),
                # weight + bias: constant index_map -> fetched once, single-buffered.
                pl.BlockSpec((K, N_pad), lambda i: (0, 0),
                             pipeline_mode=pl.Buffered(1)),
                pl.BlockSpec((1, N_pad), lambda i: (0, 0),
                             pipeline_mode=pl.Buffered(1)),
            ],
            out_specs=pl.BlockSpec((tile_b, N_pad), lambda i: (i, 0)),
        ),
        compiler_params=pltpu.CompilerParams(
            dimension_semantics=("parallel",),       # batch tiles are independent (megacore)
            vmem_limit_bytes=48 << 20,               # fits v5e/v6e (128 MiB) and v7x (64 MiB)
        ),
        cost_estimate=pl.CostEstimate(
            flops=2 * B * K * N_pad,
            transcendentals=0,
            bytes_accessed=(B * K + K * N_pad + B * N_pad) * itemsize,
        ),
    )(x_flat, w_p, b_p)

    # Single cheap column slice back to the real class count.
    return out[:, :N]


def init_params(key, input_dim, num_classes, dtype=jnp.float32):
    # Deterministic init mimicking nn.Linear's U(-1/sqrt(fan_in), 1/sqrt(fan_in)).
    kw, kb = jax.random.split(key)
    bound = 1.0 / jnp.sqrt(jnp.asarray(input_dim, dtype))
    # PyTorch stores weight as (num_classes, input_dim); we keep it transposed.
    w_t = jax.random.uniform(kw, (input_dim, num_classes), dtype, -bound, bound)
    b = jax.random.uniform(kb, (num_classes,), dtype, -bound, bound)
    return w_t, b


if __name__ == "__main__":
    key = jax.random.PRNGKey(0)
    k_x, k_p, k_x2 = jax.random.split(key, 3)

    w_t, b = init_params(k_p, INPUT_DIM, NUM_CLASSES)

    # Small input consistent with input_dim=1568: (batch=2, C=2, H=28, W=28).
    x = jax.random.normal(k_x, (2, 2, 28, 28), jnp.float32)
    out = linear_classifier_forward(x, w_t, b)
    jax.block_until_ready(out)

    ref = x.reshape(x.shape[0], -1) @ w_t + b
    assert out.shape == (2, NUM_CLASSES)
    assert jnp.allclose(out, ref, atol=1e-4, rtol=1e-4)

    # Second check: batch not a multiple of the tile, exercising the ragged multi-tile
    # grid path (partial last block clipped on write-back).
    x2 = jax.random.normal(k_x2, (20, 2, 28, 28), jnp.float32)
    out2 = linear_classifier_forward(x2, w_t, b, tile_b=8)
    jax.block_until_ready(out2)
    ref2 = x2.reshape(x2.shape[0], -1) @ w_t + b
    assert out2.shape == (20, NUM_CLASSES)
    assert jnp.allclose(out2, ref2, atol=1e-4, rtol=1e-4)

    print("KERNEL_OK")
</pallas_src>

<mosaic_0001>
module attributes {stable_mosaic.version = 11 : i64} {
  func.func @_linear_kernel(%arg0: i32, %arg1: memref<8x1568xf32, #tpu.memory_space<vmem>>, %arg2: memref<1568x128xf32, #tpu.memory_space<vmem>>, %arg3: memref<1x128xf32, #tpu.memory_space<vmem>>, %arg4: memref<8x128xf32, #tpu.memory_space<vmem>>) attributes {dimension_semantics = [#tpu.dimension_semantics<parallel>], iteration_bounds = array<i64: 1>, scalar_prefetch = 0 : i64, scratch_operands = 0 : i64, tpu.core_type = #tpu.core_type<tc>, window_params = [{transform_indices = @transform_0, window_bounds = array<i64: 8, 1568>}, {pipeline_mode = #tpu.pipeline_mode<synchronous>, transform_indices = @transform_1, window_bounds = array<i64: 1568, 128>}, {pipeline_mode = #tpu.pipeline_mode<synchronous>, transform_indices = @transform_2, window_bounds = array<i64: 1, 128>}, {transform_indices = @transform_3, window_bounds = array<i64: 8, 128>}]} {
    %c0 = arith.constant 0 : index
    %c0_0 = arith.constant 0 : index
    %0 = vector.load %arg1[%c0, %c0_0] : memref<8x1568xf32, #tpu.memory_space<vmem>>, vector<8x1568xf32>
    %c0_1 = arith.constant 0 : index
    %c0_2 = arith.constant 0 : index
    %1 = vector.load %arg2[%c0_1, %c0_2] : memref<1568x128xf32, #tpu.memory_space<vmem>>, vector<1568x128xf32>
    %cst = arith.constant dense<0.000000e+00> : vector<8x128xf32>
    %2 = tpu.matmul %0, %1, %cst {dimension_numbers = #tpu.dot_dimension_numbers<[1], [0], [0], [1], [0, 0, 1, 1], [], []>} : vector<8x1568xf32>, vector<1568x128xf32>, vector<8x128xf32> -> vector<8x128xf32>
    %c0_3 = arith.constant 0 : index
    %c0_4 = arith.constant 0 : index
    %3 = vector.load %arg3[%c0_3, %c0_4] : memref<1x128xf32, #tpu.memory_space<vmem>>, vector<1x128xf32>
    %4 = vector.broadcast %3 : vector<1x128xf32> to vector<8x128xf32>
    %5 = arith.addf %2, %4 : vector<8x128xf32>
    %c0_5 = arith.constant 0 : index
    %c0_6 = arith.constant 0 : index
    %6 = vector.load %arg4[%c0_5, %c0_6] : memref<8x128xf32, #tpu.memory_space<vmem>>, vector<8x128xf32>
    tpu.vector_store %arg4[%c0_5, %c0_6], %5 {strides = array<i32>} : memref<8x128xf32, #tpu.memory_space<vmem>>, vector<8x128xf32>,
    return
  }
  func.func @transform_0(%arg0: i32) -> (i32, i32) {
    %c0_i32 = arith.constant 0 : i32
    %c0_i32_0 = arith.constant 0 : i32
    return %arg0, %c0_i32 : i32, i32
  }
  func.func @transform_1(%arg0: i32) -> (i32, i32) {
    %c0_i32 = arith.constant 0 : i32
    %c0_i32_0 = arith.constant 0 : i32
    %c0_i32_1 = arith.constant 0 : i32
    return %c0_i32, %c0_i32_0 : i32, i32
  }
  func.func @transform_2(%arg0: i32) -> (i32, i32) {
    %c0_i32 = arith.constant 0 : i32
    %c0_i32_0 = arith.constant 0 : i32
    %c0_i32_1 = arith.constant 0 : i32
    return %c0_i32, %c0_i32_0 : i32, i32
  }
  func.func @transform_3(%arg0: i32) -> (i32, i32) {
    %c0_i32 = arith.constant 0 : i32
    %c0_i32_0 = arith.constant 0 : i32
    return %arg0, %c0_i32 : i32, i32
  }
}

</mosaic_0001>

<llo_original>
// kernel: tpu_custom_call.1
$region0: #{tpu_custom_call.1}
  #allocation0 [shape = 'u32[]', space=smem, size = 0x4, offset = 0x4, fixed_abs, tag = 'smem constant byte address 0x4 - core index']
  #allocation1 [shape = 'u32[144,128]{1,0:T(1,128)}', space=vmem, size = 0x12000, scoped, tag = 'internal scratch']
  %s0 = inlined_call_operand.hbm [shape: f32[2,1568], index: 0, kind: input, shape index: {}]
  %s1 = inlined_call_operand.hbm [shape: f32[1568,128], index: 1, kind: input, shape index: {}]
  %s2 = inlined_call_operand.vmem [shape: f32[1,128], index: 2, kind: input, shape index: {}]
  %s3 = inlined_call_operand.hbm [shape: f32[2,128], index: 3, kind: output, shape index: {}]
  %s4 = sld [smem:[#allocation0]]
  $region30: #{tpu_custom_call.1} parent=0
    _
  %s6 = ssub.s32 1, %s4
  %s7 = scalar_select 0, %s6, %s4
  $region1: #{tpu_custom_call.1} parent=0
    #allocation2 [shape = 'u8[53248]{0}', space=vmem, size = 0xd000, scoped, tag = 'input window, operand 0, single buffered']
    #allocation3 [shape = 's32[1]{0}', space=sflag, size = 0x4, scoped, tag = 'scoped memory for tpu_custom_call.1']
    #allocation4 [shape = 's32[1]{0}', space=sflag, size = 0x4, scoped, tag = 'scoped memory for tpu_custom_call.1']
    #allocation5 [shape = 'u8[802816]{0}', space=vmem, size = 0xc4000, scoped, tag = 'input window, operand 1, single buffered']
    #allocation6 [shape = 's32[1]{0}', space=sflag, size = 0x4, scoped, tag = 'scoped memory for tpu_custom_call.1']
    #allocation7 [shape = 'u8[4096]{0}', space=vmem, size = 0x1000, scoped, tag = 'output window, operand 0, single buffered']
    %8 = vsyncpa [#allocation3], 0
    %9 = vsyncpa [#allocation6], 0
    %10 = vsyncpa [#allocation4], 0
    // Predicated region
    $region2: #{tpu_custom_call.1} parent=1 // pred_check
      _
    $region3: #{tpu_custom_call.1} parent=1 // pred_check_branch
      %12 = sbr.rel (0) target = $region5
    $region4: #{tpu_custom_call.1} parent=1 // pred_region
      %s14 = ssub.s32 1664, 416
      %15 = vsyncadd [#allocation3], %s14
      %s16 = sshll.u32 [#allocation2], 4
      %s17 = int_to_ptr.vmem [resolvable:$true] %s16
      %22 = dma.hbm_to_vmem [thread:$0]  %s0, 416, %s17, [#allocation3], 416, 416, 26
    $region5: #{tpu_custom_call.1} parent=1 // pred_fallthru
      _
    // Predicated region
    $region6: #{tpu_custom_call.1} parent=1 // pred_check
      _
    $region7: #{tpu_custom_call.1} parent=1 // pred_check_branch
      %24 = sbr.rel (0) target = $region9
    $region8: #{tpu_custom_call.1} parent=1 // pred_region
      %s26 = ssub.s32 25088, 25088
      %27 = vsyncadd [#allocation6], %s26
      %s28 = sshll.u32 [#allocation5], 4
      %s29 = int_to_ptr.vmem [resolvable:$true] %s28
      %34 = dma.hbm_to_vmem [thread:$0]  %s1, 25088, %s29, [#allocation6], 128, 128, 8
    $region9: #{tpu_custom_call.1} parent=1 // pred_fallthru
      _
    // Predicated region
    $region10: #{tpu_custom_call.1} parent=1 // pred_check
      _
    $region11: #{tpu_custom_call.1} parent=1 // pred_check_branch
      %36 = sbr.rel (0) target = $region13
    $region12: #{tpu_custom_call.1} parent=1 // pred_region
      _
    $region13: #{tpu_custom_call.1} parent=1 // pred_fallthru
      _
    // Predicated region
    $region14: #{tpu_custom_call.1} parent=1 // pred_check
      _
    $region15: #{tpu_custom_call.1} parent=1 // pred_check_branch
      %38 = sbr.rel (0) target = $region17
    $region16: #{tpu_custom_call.1} parent=1 // pred_region
      %39 = dma.done [#allocation3], 1664
    $region17: #{tpu_custom_call.1} parent=1 // pred_fallthru
      _
    // Predicated region
    $region18: #{tpu_custom_call.1} parent=1 // pred_check
      _
    $region19: #{tpu_custom_call.1} parent=1 // pred_check_branch
      %41 = sbr.rel (0) target = $region21
    $region20: #{tpu_custom_call.1} parent=1 // pred_region
      %42 = dma.done [#allocation6], 25088
    $region21: #{tpu_custom_call.1} parent=1 // pred_fallthru
      _
    %v43 = vld [vmem:[#allocation2] sm:$0xff]
    %v44 = vld [vmem:[#allocation2 + $0x8] sm:$0xff]
    %v45 = vld [vmem:[#allocation2 + $0x10] sm:$0xff]
    %v46 = vld [vmem:[#allocation2 + $0x18] sm:$0x3]
    %v47 = vld [vmem:[#allocation2 + $0x1a] sm:$0xff]
    %v48 = vld [vmem:[#allocation2 + $0x22] sm:$0xff]
    %v49 = vld [vmem:[#allocation2 + $0x2a] sm:$0xff]
    %v50 = vld [vmem:[#allocation2 + $0x32] sm:$0x3]
    %v51 = vld [vmem:[#allocation2 + $0x34] sm:$0xff]
    %v52 = vld [vmem:[#allocation2 + $0x3c] sm:$0xff]
    %v53 = vld [vmem:[#allocation2 + $0x44] sm:$0xff]
    %v54 = vld [vmem:[#allocation2 + $0x4c] sm:$0x3]
    %v55 = vld [vmem:[#allocation2 + $0x4e] sm:$0xff]
    %v56 = vld [vmem:[#allocation2 + $0x56] sm:$0xff]
    %v57 = vld [vmem:[#allocation2 + $0x5e] sm:$0xff]
    %v58 = vld [vmem:[#allocation2 + $0x66] sm:$0x3]
    %v59 = vld [vmem:[#allocation5] sm:$0xff]
    %v60 = vld [vmem:[#allocation5 + $0x8] sm:$0xff]
    %v61 = vld [vmem:[#allocation5 + $0x10] sm:$0xff]
    %v62 = vld [vmem:[#allocation5 + $0x18] sm:$0xff]
    %v63 = vld [vmem:[#allocation5 + $0x20] sm:$0xff]
    %v64 = vld [vmem:[#allocation5 + $0x28] sm:$0xff]
    %v65 = vld [vmem:[#allocation5 + $0x30] sm:$0xff]
    %v66 = vld [vmem:[#allocation5 + $0x38] sm:$0xff]
    %v67 = vld [vmem:[#allocation5 + $0x40] sm:$0xff]
    %v68 = vld [vmem:[#allocation5 + $0x48] sm:$0xff]
    %v69 = vld [vmem:[#allocation5 + $0x50] sm:$0xff]
    %v70 = vld [vmem:[#allocation5 + $0x58] sm:$0xff]
    %v71 = vld [vmem:[#allocation5 + $0x60] sm:$0xff]
    %v72 = vld [vmem:[#allocation5 + $0x68] sm:$0xff]
    %v73 = vld [vmem:[#allocation5 + $0x70] sm:$0xff]
    %v74 = vld [vmem:[#allocation5 + $0x78] sm:$0xff]
    %v75 = vld [vmem:[#allocation5 + $0x80] sm:$0xff]
    %v76 = vld [vmem:[#allocation5 + $0x88] sm:$0xff]
    %v77 = vld [vmem:[#allocation5 + $0x90] sm:$0xff]
    %v78 = vld [vmem:[#allocation5 + $0x98] sm:$0xff]
    %v79 = vld [vmem:[#allocation5 + $0xa0] sm:$0xff]
    %v80 = vld [vmem:[#allocation5 + $0xa8] sm:$0xff]
    %v81 = vld [vmem:[#allocation5 + $0xb0] sm:$0xff]
    %v82 = vld [vmem:[#allocation5 + $0xb8] sm:$0xff]
    %v83 = vld [vmem:[#allocation5 + $0xc0] sm:$0xff]
    %v84 = vld [vmem:[#allocation5 + $0xc8] sm:$0xff]
    %v85 = vld [vmem:[#allocation5 + $0xd0] sm:$0xff]
    %v86 = vld [vmem:[#allocation5 + $0xd8] sm:$0xff]
    %v87 = vld [vmem:[#allocation5 + $0xe0] sm:$0xff]
    %v88 = vld [vmem:[#allocation5 + $0xe8] sm:$0xff]
    %v89 = vld [vmem:[#allocation5 + $0xf0] sm:$0xff]
    %v90 = vld [vmem:[#allocation5 + $0xf8] sm:$0xff]
    %v91 = vld [vmem:[#allocation5 + $0x100] sm:$0xff]
    %v92 = vld [vmem:[#allocation5 + $0x108] sm:$0xff]
    %v93 = vld [vmem:[#allocation5 + $0x110] sm:$0xff]
    %v94 = vld [vmem:[#allocation5 + $0x118] sm:$0xff]
    %v95 = vld [vmem:[#allocation5 + $0x120] sm:$0xff]
    %v96 = vld [vmem:[#allocation5 + $0x128] sm:$0xff]
    %v97 = vld [vmem:[#allocation5 + $0x130] sm:$0xff]
    %v98 = vld [vmem:[#allocation5 + $0x138] sm:$0xff]
    %v99 = vld [vmem:[#allocation5 + $0x140] sm:$0xff]
    %v100 = vld [vmem:[#allocation5 + $0x148] sm:$0xff]
    %v101 = vld [vmem:[#allocation5 + $0x150] sm:$0xff]
    %v102 = vld [vmem:[#allocation5 + $0x158] sm:$0xff]
    %v103 = vld [vmem:[#allocation5 + $0x160] sm:$0xff]
    %v104 = vld [vmem:[#allocation5 + $0x168] sm:$0xff]
    %v105 = vld [vmem:[#allocation5 + $0x170] sm:$0xff]
    %v106 = vld [vmem:[#allocation5 + $0x178] sm:$0xff]
    %v107 = vld [vmem:[#allocation5 + $0x180] sm:$0xff]
    %v108 = vld [vmem:[#allocation5 + $0x188] sm:$0xff]
    %v109 = vld [vmem:[#allocation5 + $0x190] sm:$0xff]
    %v110 = vld [vmem:[#allocation5 + $0x198] sm:$0xff]
    %v111 = vld [vmem:[#allocation5 + $0x1a0] sm:$0xff]
    %v112 = vld [vmem:[#allocation5 + $0x1a8] sm:$0xff]
    %v113 = vld [vmem:[#allocation5 + $0x1b0] sm:$0xff]
    %v114 = vld [vmem:[#allocation5 + $0x1b8] sm:$0xff]
    %v115 = vld [vmem:[#allocation5 + $0x1c0] sm:$0xff]
    %v116 = vld [vmem:[#allocation5 + $0x1c8] sm:$0xff]
    %v117 = vld [vmem:[#allocation5 + $0x1d0] sm:$0xff]
    %v118 = vld [vmem:[#allocation5 + $0x1d8] sm:$0xff]
    %v119 = vld [vmem:[#allocation5 + $0x1e0] sm:$0xff]
    %v120 = vld [vmem:[#allocation5 + $0x1e8] sm:$0xff]
    %v121 = vld [vmem:[#allocation5 + $0x1f0] sm:$0xff]
    %v122 = vld [vmem:[#allocation5 + $0x1f8] sm:$0xff]
    %v123 = vld [vmem:[#allocation5 + $0x200] sm:$0xff]
    %v124 = vld [vmem:[#allocation5 + $0x208] sm:$0xff]
    %v125 = vld [vmem:[#allocation5 + $0x210] sm:$0xff]
    %v126 = vld [vmem:[#allocation5 + $0x218] sm:$0xff]
    %v127 = vld [vmem:[#allocation5 + $0x220] sm:$0xff]
    %v128 = vld [vmem:[#allocation5 + $0x228] sm:$0xff]
    %v129 = vld [vmem:[#allocation5 + $0x230] sm:$0xff]
    %v130 = vld [vmem:[#allocation5 + $0x238] sm:$0xff]
    %v131 = vld [vmem:[#allocation5 + $0x240] sm:$0xff]
    %v132 = vld [vmem:[#allocation5 + $0x248] sm:$0xff]
    %v133 = vld [vmem:[#allocation5 + $0x250] sm:$0xff]
    %v134 = vld [vmem:[#allocation5 + $0x258] sm:$0xff]
    %v135 = vld [vmem:[#allocation5 + $0x260] sm:$0xff]
    %v136 = vld [vmem:[#allocation5 + $0x268] sm:$0xff]
    %v137 = vld [vmem:[#allocation5 + $0x270] sm:$0xff]
    %v138 = vld [vmem:[#allocation5 + $0x278] sm:$0xff]
    %v139 = vld [vmem:[#allocation5 + $0x280] sm:$0xff]
    %v140 = vld [vmem:[#allocation5 + $0x288] sm:$0xff]
    %v141 = vld [vmem:[#allocation5 + $0x290] sm:$0xff]
    %v142 = vld [vmem:[#allocation5 + $0x298] sm:$0xff]
    %v143 = vld [vmem:[#allocation5 + $0x2a0] sm:$0xff]
    %v144 = vld [vmem:[#allocation5 + $0x2a8] sm:$0xff]
    %v145 = vld [vmem:[#allocation5 + $0x2b0] sm:$0xff]
    %v146 = vld [vmem:[#allocation5 + $0x2b8] sm:$0xff]
    %v147 = vld [vmem:[#allocation5 + $0x2c0] sm:$0xff]
    %v148 = vld [vmem:[#allocation5 + $0x2c8] sm:$0xff]
    %v149 = vld [vmem:[#allocation5 + $0x2d0] sm:$0xff]
    %v150 = vld [vmem:[#allocation5 + $0x2d8] sm:$0xff]
    %v151 = vld [vmem:[#allocation5 + $0x2e0] sm:$0xff]
    %v152 = vld [vmem:[#allocation5 + $0x2e8] sm:$0xff]
    %v153 = vld [vmem:[#allocation5 + $0x2f0] sm:$0xff]
    %v154 = vld [vmem:[#allocation5 + $0x2f8] sm:$0xff]
    %v155 = vld [vmem:[#allocation5 + $0x300] sm:$0xff]
    %v156 = vld [vmem:[#allocation5 + $0x308] sm:$0xff]
    %v157 = vld [vmem:[#allocation5 + $0x310] sm:$0xff]
    %v158 = vld [vmem:[#allocation5 + $0x318] sm:$0xff]
    %v159 = vld [vmem:[#allocation5 + $0x320] sm:$0xff]
    %v160 = vld [vmem:[#allocation5 + $0x328] sm:$0xff]
    %v161 = vld [vmem:[#allocation5 + $0x330] sm:$0xff]
    %v162 = vld [vmem:[#allocation5 + $0x338] sm:$0xff]
    %v163 = vld [vmem:[#allocation5 + $0x340] sm:$0xff]
    %v164 = vld [vmem:[#allocation5 + $0x348] sm:$0xff]
    %v165 = vld [vmem:[#allocation5 + $0x350] sm:$0xff]
    %v166 = vld [vmem:[#allocation5 + $0x358] sm:$0xff]
    %v167 = vld [vmem:[#allocation5 + $0x360] sm:$0xff]
    %v168 = vld [vmem:[#allocation5 + $0x368] sm:$0xff]
    %v169 = vld [vmem:[#allocation5 + $0x370] sm:$0xff]
    %v170 = vld [vmem:[#allocation5 + $0x378] sm:$0xff]
    %v171 = vld [vmem:[#allocation5 + $0x380] sm:$0xff]
    %v172 = vld [vmem:[#allocation5 + $0x388] sm:$0xff]
    %v173 = vld [vmem:[#allocation5 + $0x390] sm:$0xff]
    %v174 = vld [vmem:[#allocation5 + $0x398] sm:$0xff]
    %v175 = vld [vmem:[#allocation5 + $0x3a0] sm:$0xff]
    %v176 = vld [vmem:[#allocation5 + $0x3a8] sm:$0xff]
    %v177 = vld [vmem:[#allocation5 + $0x3b0] sm:$0xff]
    %v178 = vld [vmem:[#allocation5 + $0x3b8] sm:$0xff]
    %v179 = vld [vmem:[#allocation5 + $0x3c0] sm:$0xff]
    %v180 = vld [vmem:[#allocation5 + $0x3c8] sm:$0xff]
    %v181 = vld [vmem:[#allocation5 + $0x3d0] sm:$0xff]
    %v182 = vld [vmem:[#allocation5 + $0x3d8] sm:$0xff]
    %v183 = vld [vmem:[#allocation5 + $0x3e0] sm:$0xff]
    %v184 = vld [vmem:[#allocation5 + $0x3e8] sm:$0xff]
    %v185 = vld [vmem:[#allocation5 + $0x3f0] sm:$0xff]
    %v186 = vld [vmem:[#allocation5 + $0x3f8] sm:$0xff]
    %v187 = vld [vmem:[#allocation5 + $0x400] sm:$0xff]
    %v188 = vld [vmem:[#allocation5 + $0x408] sm:$0xff]
    %v189 = vld [vmem:[#allocation5 + $0x410] sm:$0xff]
    %v190 = vld [vmem:[#allocation5 + $0x418] sm:$0xff]
    %v191 = vld [vmem:[#allocation5 + $0x420] sm:$0xff]
    %v192 = vld [vmem:[#allocation5 + $0x428] sm:$0xff]
    %v193 = vld [vmem:[#allocation5 + $0x430] sm:$0xff]
    %v194 = vld [vmem:[#allocation5 + $0x438] sm:$0xff]
    %v195 = vld [vmem:[#allocation5 + $0x440] sm:$0xff]
    %v196 = vld [vmem:[#allocation5 + $0x448] sm:$0xff]
    %v197 = vld [vmem:[#allocation5 + $0x450] sm:$0xff]
    %v198 = vld [vmem:[#allocation5 + $0x458] sm:$0xff]
    %v199 = vld [vmem:[#allocation5 + $0x460] sm:$0xff]
    %v200 = vld [vmem:[#allocation5 + $0x468] sm:$0xff]
    %v201 = vld [vmem:[#allocation5 + $0x470] sm:$0xff]
    %v202 = vld [vmem:[#allocation5 + $0x478] sm:$0xff]
    %v203 = vld [vmem:[#allocation5 + $0x480] sm:$0xff]
    %v204 = vld [vmem:[#allocation5 + $0x488] sm:$0xff]
    %v205 = vld [vmem:[#allocation5 + $0x490] sm:$0xff]
    %v206 = vld [vmem:[#allocation5 + $0x498] sm:$0xff]
    %v207 = vld [vmem:[#allocation5 + $0x4a0] sm:$0xff]
    %v208 = vld [vmem:[#allocation5 + $0x4a8] sm:$0xff]
    %v209 = vld [vmem:[#allocation5 + $0x4b0] sm:$0xff]
    %v210 = vld [vmem:[#allocation5 + $0x4b8] sm:$0xff]
    %v211 = vld [vmem:[#allocation5 + $0x4c0] sm:$0xff]
    %v212 = vld [vmem:[#allocation5 + $0x4c8] sm:$0xff]
    %v213 = vld [vmem:[#allocation5 + $0x4d0] sm:$0xff]
    %v214 = vld [vmem:[#allocation5 + $0x4d8] sm:$0xff]
    %v215 = vld [vmem:[#allocation5 + $0x4e0] sm:$0xff]
    %v216 = vld [vmem:[#allocation5 + $0x4e8] sm:$0xff]
    %v217 = vld [vmem:[#allocation5 + $0x4f0] sm:$0xff]
    %v218 = vld [vmem:[#allocation5 + $0x4f8] sm:$0xff]
    %v219 = vld [vmem:[#allocation5 + $0x500] sm:$0xff]
    %v220 = vld [vmem:[#allocation5 + $0x508] sm:$0xff]
    %v221 = vld [vmem:[#allocation5 + $0x510] sm:$0xff]
    %v222 = vld [vmem:[#allocation5 + $0x518] sm:$0xff]
    %v223 = vld [vmem:[#allocation5 + $0x520] sm:$0xff]
    %v224 = vld [vmem:[#allocation5 + $0x528] sm:$0xff]
    %v225 = vld [vmem:[#allocation5 + $0x530] sm:$0xff]
    %v226 = vld [vmem:[#allocation5 + $0x538] sm:$0xff]
    %v227 = vld [vmem:[#allocation5 + $0x540] sm:$0xff]
    %v228 = vld [vmem:[#allocation5 + $0x548] sm:$0xff]
    %v229 = vld [vmem:[#allocation5 + $0x550] sm:$0xff]
    %v230 = vld [vmem:[#allocation5 + $0x558] sm:$0xff]
    %v231 = vld [vmem:[#allocation5 + $0x560] sm:$0xff]
    %v232 = vld [vmem:[#allocation5 + $0x568] sm:$0xff]
    %v233 = vld [vmem:[#allocation5 + $0x570] sm:$0xff]
    %v234 = vld [vmem:[#allocation5 + $0x578] sm:$0xff]
    %v235 = vld [vmem:[#allocation5 + $0x580] sm:$0xff]
    %v236 = vld [vmem:[#allocation5 + $0x588] sm:$0xff]
    %v237 = vld [vmem:[#allocation5 + $0x590] sm:$0xff]
    %v238 = vld [vmem:[#allocation5 + $0x598] sm:$0xff]
    %v239 = vld [vmem:[#allocation5 + $0x5a0] sm:$0xff]
    %v240 = vld [vmem:[#allocation5 + $0x5a8] sm:$0xff]
    %v241 = vld [vmem:[#allocation5 + $0x5b0] sm:$0xff]
    %v242 = vld [vmem:[#allocation5 + $0x5b8] sm:$0xff]
    %v243 = vld [vmem:[#allocation5 + $0x5c0] sm:$0xff]
    %v244 = vld [vmem:[#allocation5 + $0x5c8] sm:$0xff]
    %v245 = vld [vmem:[#allocation5 + $0x5d0] sm:$0xff]
    %v246 = vld [vmem:[#allocation5 + $0x5d8] sm:$0xff]
    %v247 = vld [vmem:[#allocation5 + $0x5e0] sm:$0xff]
    %v248 = vld [vmem:[#allocation5 + $0x5e8] sm:$0xff]
    %v249 = vld [vmem:[#allocation5 + $0x5f0] sm:$0xff]
    %v250 = vld [vmem:[#allocation5 + $0x5f8] sm:$0xff]
    %v251 = vld [vmem:[#allocation5 + $0x600] sm:$0xff]
    %v252 = vld [vmem:[#allocation5 + $0x608] sm:$0xff]
    %v253 = vld [vmem:[#allocation5 + $0x610] sm:$0xff]
    %v254 = vld [vmem:[#allocation5 + $0x618] sm:$0xff]
    %v255 = vld [vmem:[%s2] sm:$0x1]
    %v257 = vlaneseq
    %v258 = vshrl.u32 %v257, 7
    %v259 = vsub.s32 0, %v258
    %v260 = vrot.slane %v255, %v259
    %v278 = vcombine.low %v43, %v47
    %v279 = vcombine.high %v43, %v47
    %v280 = vcombine.low %v51, %v55
    %v281 = vcombine.high %v51, %v55
    %v283 = vunpack.c.l.s4 1983009808
    %v284 = vunpack.c.0.s8 %v283
    %v285 = vlaneseq
    %v286 = vshrl.u32 %v285, 7
    %v287 = vsub.s32 %v284, %v286
    %v288 = vrot.slane %v278, %v287
    %v290 = vunpack.c.l.s4 1983009808
    %v291 = vunpack.c.0.s8 %v290
    %v292 = vlaneseq
    %v293 = vshrl.u32 %v292, 7
    %v294 = vsub.s32 %v291, %v293
    %v295 = vrot.slane %v279, %v294
    %v297 = vunpack.c.l.s4 1983009808
    %v298 = vunpack.c.0.s8 %v297
    %v299 = vlaneseq
    %v300 = vshrl.u32 %v299, 7
    %v301 = vsub.s32 %v298, %v300
    %v302 = vrot.slane %v280, %v301
    %v304 = vunpack.c.l.s4 1983009808
    %v305 = vunpack.c.0.s8 %v304
    %v306 = vlaneseq
    %v307 = vshrl.u32 %v306, 7
    %v308 = vsub.s32 %v305, %v307
    %v309 = vrot.slane %v281, %v308
    %v310 = vcombine.low %v288, %v302
    %v311 = vcombine.high %v288, %v302
    %v312 = vcombine.low %v295, %v309
    %v313 = vcombine.high %v295, %v309
    %v314 = vcombine.low %v44, %v48
    %v315 = vcombine.high %v44, %v48
    %v316 = vcombine.low %v52, %v56
    %v317 = vcombine.high %v52, %v56
    %v319 = vunpack.c.l.s4 1983009808
    %v320 = vunpack.c.0.s8 %v319
    %v321 = vlaneseq
    %v322 = vshrl.u32 %v321, 7
    %v323 = vsub.s32 %v320, %v322
    %v324 = vrot.slane %v314, %v323
    %v326 = vunpack.c.l.s4 1983009808
    %v327 = vunpack.c.0.s8 %v326
    %v328 = vlaneseq
    %v329 = vshrl.u32 %v328, 7
    %v330 = vsub.s32 %v327, %v329
    %v331 = vrot.slane %v315, %v330
    %v333 = vunpack.c.l.s4 1983009808
    %v334 = vunpack.c.0.s8 %v333
    %v335 = vlaneseq
    %v336 = vshrl.u32 %v335, 7
    %v337 = vsub.s32 %v334, %v336
    %v338 = vrot.slane %v316, %v337
    %v340 = vunpack.c.l.s4 1983009808
    %v341 = vunpack.c.0.s8 %v340
    %v342 = vlaneseq
    %v343 = vshrl.u32 %v342, 7
    %v344 = vsub.s32 %v341, %v343
    %v345 = vrot.slane %v317, %v344
    %v346 = vcombine.low %v324, %v338
    %v347 = vcombine.high %v324, %v338
    %v348 = vcombine.low %v331, %v345
    %v349 = vcombine.high %v331, %v345
    %v350 = vcombine.low %v45, %v49
    %v351 = vcombine.high %v45, %v49
    %v352 = vcombine.low %v53, %v57
    %v353 = vcombine.high %v53, %v57
    %v355 = vunpack.c.l.s4 1983009808
    %v356 = vunpack.c.0.s8 %v355
    %v357 = vlaneseq
    %v358 = vshrl.u32 %v357, 7
    %v359 = vsub.s32 %v356, %v358
    %v360 = vrot.slane %v350, %v359
    %v362 = vunpack.c.l.s4 1983009808
    %v363 = vunpack.c.0.s8 %v362
    %v364 = vlaneseq
    %v365 = vshrl.u32 %v364, 7
    %v366 = vsub.s32 %v363, %v365
    %v367 = vrot.slane %v351, %v366
    %v369 = vunpack.c.l.s4 1983009808
    %v370 = vunpack.c.0.s8 %v369
    %v371 = vlaneseq
    %v372 = vshrl.u32 %v371, 7
    %v373 = vsub.s32 %v370, %v372
    %v374 = vrot.slane %v352, %v373
    %v376 = vunpack.c.l.s4 1983009808
    %v377 = vunpack.c.0.s8 %v376
    %v378 = vlaneseq
    %v379 = vshrl.u32 %v378, 7
    %v380 = vsub.s32 %v377, %v379
    %v381 = vrot.slane %v353, %v380
    %v382 = vcombine.low %v360, %v374
    %v383 = vcombine.high %v360, %v374
    %v384 = vcombine.low %v367, %v381
    %v385 = vcombine.high %v367, %v381
    %v386 = vcombine.low %v46, %v50
    %v387 = vcombine.low %v54, %v58
    %v389 = vunpack.c.l.s4 1983009808
    %v390 = vunpack.c.0.s8 %v389
    %v391 = vlaneseq
    %v392 = vshrl.u32 %v391, 7
    %v393 = vsub.s32 %v390, %v392
    %v394 = vrot.slane %v386, %v393
    %v396 = vunpack.c.l.s4 1983009808
    %v397 = vunpack.c.0.s8 %v396
    %v398 = vlaneseq
    %v399 = vshrl.u32 %v398, 7
    %v400 = vsub.s32 %v397, %v399
    %v401 = vrot.slane %v387, %v400
    %v402 = vcombine.low %v394, %v401
    %vm415 = vcmask 261120
    %v416 = vsel %vm415, %v402, 0
    %418 = vmatprep.subr.mxu0 0.0
    %419 = vmatpush1.msra.mxu0 %v59
    %420 = vmatprep.subr.mxu0 0.0
    %421 = vmatpush1.msra.mxu0 %v60
    %422 = vmatprep.subr.mxu0 0.0
    %423 = vmatpush1.msra.mxu0 %v61
    %424 = vmatprep.subr.mxu0 0.0
    %425 = vmatpush1.msra.mxu0 %v62
    %426 = vmatprep.subr.mxu0 0.0
    %427 = vmatpush1.msra.mxu0 %v63
    %428 = vmatprep.subr.mxu0 0.0
    %429 = vmatpush1.msra.mxu0 %v64
    %430 = vmatprep.subr.mxu0 0.0
    %431 = vmatpush1.msra.mxu0 %v65
    %432 = vmatprep.subr.mxu0 0.0
    %433 = vmatpush1.msra.mxu0 %v66
    %434 = vmatprep.subr.mxu0 0.0
    %435 = vmatpush1.msra.mxu0 %v67
    %436 = vmatprep.subr.mxu0 0.0
    %437 = vmatpush1.msra.mxu0 %v68
    %438 = vmatprep.subr.mxu0 0.0
    %439 = vmatpush1.msra.mxu0 %v69
    %440 = vmatprep.subr.mxu0 0.0
    %441 = vmatpush1.msra.mxu0 %v70
    %442 = vmatprep.subr.mxu0 0.0
    %443 = vmatpush1.msra.mxu0 %v71
    %444 = vmatprep.subr.mxu0 0.0
    %445 = vmatpush1.msra.mxu0 %v72
    %446 = vmatprep.subr.mxu0 0.0
    %447 = vmatpush1.msra.mxu0 %v73
    %448 = vmatprep.subr.mxu0 0.0
    %449 = vmatpush1.msra.mxu0 %v74
    %450 = vmatprep.subr.mxu0 0.0
    %451 = vmatpush1.msra.mxu0 %v75
    %452 = vmatprep.subr.mxu0 0.0
    %453 = vmatpush1.msra.mxu0 %v76
    %454 = vmatprep.subr.mxu0 0.0
    %455 = vmatpush1.msra.mxu0 %v77
    %456 = vmatprep.subr.mxu0 0.0
    %457 = vmatpush1.msra.mxu0 %v78
    %458 = vmatprep.subr.mxu0 0.0
    %459 = vmatpush1.msra.mxu0 %v79
    %460 = vmatprep.subr.mxu0 0.0
    %461 = vmatpush1.msra.mxu0 %v80
    %462 = vmatprep.subr.mxu0 0.0
    %463 = vmatpush1.msra.mxu0 %v81
    %464 = vmatprep.subr.mxu0 0.0
    %465 = vmatpush1.msra.mxu0 %v82
    %466 = vmatprep.subr.mxu0 0.0
    %467 = vmatpush1.msra.mxu0 %v83
    %468 = vmatprep.subr.mxu0 0.0
    %469 = vmatpush1.msra.mxu0 %v84
    %470 = vmatprep.subr.mxu0 0.0
    %471 = vmatpush1.msra.mxu0 %v85
    %472 = vmatprep.subr.mxu0 0.0
    %473 = vmatpush1.msra.mxu0 %v86
    %474 = vmatprep.subr.mxu0 0.0
    %475 = vmatpush1.msra.mxu0 %v87
    %476 = vmatprep.subr.mxu0 0.0
    %477 = vmatpush1.msra.mxu0 %v88
    %478 = vmatprep.subr.mxu0 0.0
    %479 = vmatpush1.msra.mxu0 %v89
    %480 = vmatprep.subr.mxu0 0.0
    %481 = vmatpush1.msra.mxu0 %v90
    %482 = vmatprep.mubr.f32.mxu0 %v311
    %483 = vmatmul.mubr.f32.gmra.mrb[0].mxu0 %v310
    %v484 = vpop.f32.mrb[0].mxu0
    %v485 = vadd.f32 %v260, %v484
    %v486 = vpop.f32.mrb[0].mxu0
    %487 = vdwg.mxu0
    %488 = vmatprep.subr.mxu0 0.0
    %489 = vmatpush1.msra.mxu0 %v91
    %490 = vmatprep.subr.mxu0 0.0
    %491 = vmatpush1.msra.mxu0 %v92
    %492 = vmatprep.subr.mxu0 0.0
    %493 = vmatpush1.msra.mxu0 %v93
    %494 = vmatprep.subr.mxu0 0.0
    %495 = vmatpush1.msra.mxu0 %v94
    %496 = vmatprep.subr.mxu0 0.0
    %497 = vmatpush1.msra.mxu0 %v95
    %498 = vmatprep.subr.mxu0 0.0
    %499 = vmatpush1.msra.mxu0 %v96
    %500 = vmatprep.subr.mxu0 0.0
    %501 = vmatpush1.msra.mxu0 %v97
    %502 = vmatprep.subr.mxu0 0.0
    %503 = vmatpush1.msra.mxu0 %v98
    %504 = vmatprep.subr.mxu0 0.0
    %505 = vmatpush1.msra.mxu0 %v99
    %506 = vmatprep.subr.mxu0 0.0
    %507 = vmatpush1.msra.mxu0 %v100
    %508 = vmatprep.subr.mxu0 0.0
    %509 = vmatpush1.msra.mxu0 %v101
    %510 = vmatprep.subr.mxu0 0.0
    %511 = vmatpush1.msra.mxu0 %v102
    %512 = vmatprep.subr.mxu0 0.0
    %513 = vmatpush1.msra.mxu0 %v103
    %514 = vmatprep.subr.mxu0 0.0
    %515 = vmatpush1.msra.mxu0 %v104
    %516 = vmatprep.subr.mxu0 0.0
    %517 = vmatpush1.msra.mxu0 %v105
    %518 = vmatprep.subr.mxu0 0.0
    %519 = vmatpush1.msra.mxu0 %v106
    %520 = vmatprep.subr.mxu0 0.0
    %521 = vmatpush1.msra.mxu0 %v107
    %522 = vmatprep.subr.mxu0 0.0
    %523 = vmatpush1.msra.mxu0 %v108
    %524 = vmatprep.subr.mxu0 0.0
    %525 = vmatpush1.msra.mxu0 %v109
    %526 = vmatprep.subr.mxu0 0.0
    %527 = vmatpush1.msra.mxu0 %v110
    %528 = vmatprep.subr.mxu0 0.0
    %529 = vmatpush1.msra.mxu0 %v111
    %530 = vmatprep.subr.mxu0 0.0
    %531 = vmatpush1.msra.mxu0 %v112
    %532 = vmatprep.subr.mxu0 0.0
    %533 = vmatpush1.msra.mxu0 %v113
    %534 = vmatprep.subr.mxu0 0.0
    %535 = vmatpush1.msra.mxu0 %v114
    %536 = vmatprep.subr.mxu0 0.0
    %537 = vmatpush1.msra.mxu0 %v115
    %538 = vmatprep.subr.mxu0 0.0
    %539 = vmatpush1.msra.mxu0 %v116
    %540 = vmatprep.subr.mxu0 0.0
    %541 = vmatpush1.msra.mxu0 %v117
    %542 = vmatprep.subr.mxu0 0.0
    %543 = vmatpush1.msra.mxu0 %v118
    %544 = vmatprep.subr.mxu0 0.0
    %545 = vmatpush1.msra.mxu0 %v119
    %546 = vmatprep.subr.mxu0 0.0
    %547 = vmatpush1.msra.mxu0 %v120
    %548 = vmatprep.subr.mxu0 0.0
    %549 = vmatpush1.msra.mxu0 %v121
    %550 = vmatprep.subr.mxu0 0.0
    %551 = vmatpush1.msra.mxu0 %v122
    %552 = vmatprep.mubr.f32.mxu0 %v313
    %553 = vmatmul.mubr.f32.gmra.mrb[0].mxu0 %v312
    %v554 = vpop.f32.mrb[0].mxu0
    %v555 = vadd.f32 %v485, %v554
    %v556 = vpop.f32.mrb[0].mxu0
    %557 = vdwg.mxu0
    %558 = vmatprep.subr.mxu0 0.0
    %559 = vmatpush1.msra.mxu0 %v123
    %560 = vmatprep.subr.mxu0 0.0
    %561 = vmatpush1.msra.mxu0 %v124
    %562 = vmatprep.subr.mxu0 0.0
    %563 = vmatpush1.msra.mxu0 %v125
    %564 = vmatprep.subr.mxu0 0.0
    %565 = vmatpush1.msra.mxu0 %v126
    %566 = vmatprep.subr.mxu0 0.0
    %567 = vmatpush1.msra.mxu0 %v127
    %568 = vmatprep.subr.mxu0 0.0
    %569 = vmatpush1.msra.mxu0 %v128
    %570 = vmatprep.subr.mxu0 0.0
    %571 = vmatpush1.msra.mxu0 %v129
    %572 = vmatprep.subr.mxu0 0.0
    %573 = vmatpush1.msra.mxu0 %v130
    %574 = vmatprep.subr.mxu0 0.0
    %575 = vmatpush1.msra.mxu0 %v131
    %576 = vmatprep.subr.mxu0 0.0
    %577 = vmatpush1.msra.mxu0 %v132
    %578 = vmatprep.subr.mxu0 0.0
    %579 = vmatpush1.msra.mxu0 %v133
    %580 = vmatprep.subr.mxu0 0.0
    %581 = vmatpush1.msra.mxu0 %v134
    %582 = vmatprep.subr.mxu0 0.0
    %583 = vmatpush1.msra.mxu0 %v135
    %584 = vmatprep.subr.mxu0 0.0
    %585 = vmatpush1.msra.mxu0 %v136
    %586 = vmatprep.subr.mxu0 0.0
    %587 = vmatpush1.msra.mxu0 %v137
    %588 = vmatprep.subr.mxu0 0.0
    %589 = vmatpush1.msra.mxu0 %v138
    %590 = vmatprep.subr.mxu0 0.0
    %591 = vmatpush1.msra.mxu0 %v139
    %592 = vmatprep.subr.mxu0 0.0
    %593 = vmatpush1.msra.mxu0 %v140
    %594 = vmatprep.subr.mxu0 0.0
    %595 = vmatpush1.msra.mxu0 %v141
    %596 = vmatprep.subr.mxu0 0.0
    %597 = vmatpush1.msra.mxu0 %v142
    %598 = vmatprep.subr.mxu0 0.0
    %599 = vmatpush1.msra.mxu0 %v143
    %600 = vmatprep.subr.mxu0 0.0
    %601 = vmatpush1.msra.mxu0 %v144
    %602 = vmatprep.subr.mxu0 0.0
    %603 = vmatpush1.msra.mxu0 %v145
    %604 = vmatprep.subr.mxu0 0.0
    %605 = vmatpush1.msra.mxu0 %v146
    %606 = vmatprep.subr.mxu0 0.0
    %607 = vmatpush1.msra.mxu0 %v147
    %608 = vmatprep.subr.mxu0 0.0
    %609 = vmatpush1.msra.mxu0 %v148
    %610 = vmatprep.subr.mxu0 0.0
    %611 = vmatpush1.msra.mxu0 %v149
    %612 = vmatprep.subr.mxu0 0.0
    %613 = vmatpush1.msra.mxu0 %v150
    %614 = vmatprep.subr.mxu0 0.0
    %615 = vmatpush1.msra.mxu0 %v151
    %616 = vmatprep.subr.mxu0 0.0
    %617 = vmatpush1.msra.mxu0 %v152
    %618 = vmatprep.subr.mxu0 0.0
    %619 = vmatpush1.msra.mxu0 %v153
    %620 = vmatprep.subr.mxu0 0.0
    %621 = vmatpush1.msra.mxu0 %v154
    %622 = vmatprep.mubr.f32.mxu0 %v347
    %623 = vmatmul.mubr.f32.gmra.mrb[0].mxu0 %v346
    %v624 = vpop.f32.mrb[0].mxu0
    %v625 = vadd.f32 %v555, %v624
    %v626 = vpop.f32.mrb[0].mxu0
    %627 = vdwg.mxu0
    %628 = vmatprep.subr.mxu0 0.0
    %629 = vmatpush1.msra.mxu0 %v155
    %630 = vmatprep.subr.mxu0 0.0
    %631 = vmatpush1.msra.mxu0 %v156
    %632 = vmatprep.subr.mxu0 0.0
    %633 = vmatpush1.msra.mxu0 %v157
    %634 = vmatprep.subr.mxu0 0.0
    %635 = vmatpush1.msra.mxu0 %v158
    %636 = vmatprep.subr.mxu0 0.0
    %637 = vmatpush1.msra.mxu0 %v159
    %638 = vmatprep.subr.mxu0 0.0
    %639 = vmatpush1.msra.mxu0 %v160
    %640 = vmatprep.subr.mxu0 0.0
    %641 = vmatpush1.msra.mxu0 %v161
    %642 = vmatprep.subr.mxu0 0.0
    %643 = vmatpush1.msra.mxu0 %v162
    %644 = vmatprep.subr.mxu0 0.0
    %645 = vmatpush1.msra.mxu0 %v163
    %646 = vmatprep.subr.mxu0 0.0
    %647 = vmatpush1.msra.mxu0 %v164
    %648 = vmatprep.subr.mxu0 0.0
    %649 = vmatpush1.msra.mxu0 %v165
    %650 = vmatprep.subr.mxu0 0.0
    %651 = vmatpush1.msra.mxu0 %v166
    %652 = vmatprep.subr.mxu0 0.0
    %653 = vmatpush1.msra.mxu0 %v167
    %654 = vmatprep.subr.mxu0 0.0
    %655 = vmatpush1.msra.mxu0 %v168
    %656 = vmatprep.subr.mxu0 0.0
    %657 = vmatpush1.msra.mxu0 %v169
    %658 = vmatprep.subr.mxu0 0.0
    %659 = vmatpush1.msra.mxu0 %v170
    %660 = vmatprep.subr.mxu0 0.0
    %661 = vmatpush1.msra.mxu0 %v171
    %662 = vmatprep.subr.mxu0 0.0
    %663 = vmatpush1.msra.mxu0 %v172
    %664 = vmatprep.subr.mxu0 0.0
    %665 = vmatpush1.msra.mxu0 %v173
    %666 = vmatprep.subr.mxu0 0.0
    %667 = vmatpush1.msra.mxu0 %v174
    %668 = vmatprep.subr.mxu0 0.0
    %669 = vmatpush1.msra.mxu0 %v175
    %670 = vmatprep.subr.mxu0 0.0
    %671 = vmatpush1.msra.mxu0 %v176
    %672 = vmatprep.subr.mxu0 0.0
    %673 = vmatpush1.msra.mxu0 %v177
    %674 = vmatprep.subr.mxu0 0.0
    %675 = vmatpush1.msra.mxu0 %v178
    %676 = vmatprep.subr.mxu0 0.0
    %677 = vmatpush1.msra.mxu0 %v179
    %678 = vmatprep.subr.mxu0 0.0
    %679 = vmatpush1.msra.mxu0 %v180
    %680 = vmatprep.subr.mxu0 0.0
    %681 = vmatpush1.msra.mxu0 %v181
    %682 = vmatprep.subr.mxu0 0.0
    %683 = vmatpush1.msra.mxu0 %v182
    %684 = vmatprep.subr.mxu0 0.0
    %685 = vmatpush1.msra.mxu0 %v183
    %686 = vmatprep.subr.mxu0 0.0
    %687 = vmatpush1.msra.mxu0 %v184
    %688 = vmatprep.subr.mxu0 0.0
    %689 = vmatpush1.msra.mxu0 %v185
    %690 = vmatprep.subr.mxu0 0.0
    %691 = vmatpush1.msra.mxu0 %v186
    %692 = vmatprep.mubr.f32.mxu0 %v349
    %693 = vmatmul.mubr.f32.gmra.mrb[0].mxu0 %v348
    %v694 = vpop.f32.mrb[0].mxu0
    %v695 = vadd.f32 %v625, %v694
    %v696 = vpop.f32.mrb[0].mxu0
    %697 = vdwg.mxu0
    %698 = vmatprep.subr.mxu0 0.0
    %699 = vmatpush1.msra.mxu0 %v187
    %700 = vmatprep.subr.mxu0 0.0
    %701 = vmatpush1.msra.mxu0 %v188
    %702 = vmatprep.subr.mxu0 0.0
    %703 = vmatpush1.msra.mxu0 %v189
    %704 = vmatprep.subr.mxu0 0.0
    %705 = vmatpush1.msra.mxu0 %v190
    %706 = vmatprep.subr.mxu0 0.0
    %707 = vmatpush1.msra.mxu0 %v191
    %708 = vmatprep.subr.mxu0 0.0
    %709 = vmatpush1.msra.mxu0 %v192
    %710 = vmatprep.subr.mxu0 0.0
    %711 = vmatpush1.msra.mxu0 %v193
    %712 = vmatprep.subr.mxu0 0.0
    %713 = vmatpush1.msra.mxu0 %v194
    %714 = vmatprep.subr.mxu0 0.0
    %715 = vmatpush1.msra.mxu0 %v195
    %716 = vmatprep.subr.mxu0 0.0
    %717 = vmatpush1.msra.mxu0 %v196
    %718 = vmatprep.subr.mxu0 0.0
    %719 = vmatpush1.msra.mxu0 %v197
    %720 = vmatprep.subr.mxu0 0.0
    %721 = vmatpush1.msra.mxu0 %v198
    %722 = vmatprep.subr.mxu0 0.0
    %723 = vmatpush1.msra.mxu0 %v199
    %724 = vmatprep.subr.mxu0 0.0
    %725 = vmatpush1.msra.mxu0 %v200
    %726 = vmatprep.subr.mxu0 0.0
    %727 = vmatpush1.msra.mxu0 %v201
    %728 = vmatprep.subr.mxu0 0.0
    %729 = vmatpush1.msra.mxu0 %v202
    %730 = vmatprep.subr.mxu0 0.0
    %731 = vmatpush1.msra.mxu0 %v203
    %732 = vmatprep.subr.mxu0 0.0
    %733 = vmatpush1.msra.mxu0 %v204
    %734 = vmatprep.subr.mxu0 0.0
    %735 = vmatpush1.msra.mxu0 %v205
    %736 = vmatprep.subr.mxu0 0.0
    %737 = vmatpush1.msra.mxu0 %v206
    %738 = vmatprep.subr.mxu0 0.0
    %739 = vmatpush1.msra.mxu0 %v207
    %740 = vmatprep.subr.mxu0 0.0
    %741 = vmatpush1.msra.mxu0 %v208
    %742 = vmatprep.subr.mxu0 0.0
    %743 = vmatpush1.msra.mxu0 %v209
    %744 = vmatprep.subr.mxu0 0.0
    %745 = vmatpush1.msra.mxu0 %v210
    %746 = vmatprep.subr.mxu0 0.0
    %747 = vmatpush1.msra.mxu0 %v211
    %748 = vmatprep.subr.mxu0 0.0
    %749 = vmatpush1.msra.mxu0 %v212
    %750 = vmatprep.subr.mxu0 0.0
    %751 = vmatpush1.msra.mxu0 %v213
    %752 = vmatprep.subr.mxu0 0.0
    %753 = vmatpush1.msra.mxu0 %v214
    %754 = vmatprep.subr.mxu0 0.0
    %755 = vmatpush1.msra.mxu0 %v215
    %756 = vmatprep.subr.mxu0 0.0
    %757 = vmatpush1.msra.mxu0 %v216
    %758 = vmatprep.subr.mxu0 0.0
    %759 = vmatpush1.msra.mxu0 %v217
    %760 = vmatprep.subr.mxu0 0.0
    %761 = vmatpush1.msra.mxu0 %v218
    %762 = vmatprep.mubr.f32.mxu0 %v383
    %763 = vmatmul.mubr.f32.gmra.mrb[0].mxu0 %v382
    %v764 = vpop.f32.mrb[0].mxu0
    %v765 = vadd.f32 %v695, %v764
    %v766 = vpop.f32.mrb[0].mxu0
    %767 = vdwg.mxu0
    %768 = vmatprep.subr.mxu0 0.0
    %769 = vmatpush1.msra.mxu0 %v219
    %770 = vmatprep.subr.mxu0 0.0
    %771 = vmatpush1.msra.mxu0 %v220
    %772 = vmatprep.subr.mxu0 0.0
    %773 = vmatpush1.msra.mxu0 %v221
    %774 = vmatprep.subr.mxu0 0.0
    %775 = vmatpush1.msra.mxu0 %v222
    %776 = vmatprep.subr.mxu0 0.0
    %777 = vmatpush1.msra.mxu0 %v223
    %778 = vmatprep.subr.mxu0 0.0
    %779 = vmatpush1.msra.mxu0 %v224
    %780 = vmatprep.subr.mxu0 0.0
    %781 = vmatpush1.msra.mxu0 %v225
    %782 = vmatprep.subr.mxu0 0.0
    %783 = vmatpush1.msra.mxu0 %v226
    %784 = vmatprep.subr.mxu0 0.0
    %785 = vmatpush1.msra.mxu0 %v227
    %786 = vmatprep.subr.mxu0 0.0
    %787 = vmatpush1.msra.mxu0 %v228
    %788 = vmatprep.subr.mxu0 0.0
    %789 = vmatpush1.msra.mxu0 %v229
    %790 = vmatprep.subr.mxu0 0.0
    %791 = vmatpush1.msra.mxu0 %v230
    %792 = vmatprep.subr.mxu0 0.0
    %793 = vmatpush1.msra.mxu0 %v231
    %794 = vmatprep.subr.mxu0 0.0
    %795 = vmatpush1.msra.mxu0 %v232
    %796 = vmatprep.subr.mxu0 0.0
    %797 = vmatpush1.msra.mxu0 %v233
    %798 = vmatprep.subr.mxu0 0.0
    %799 = vmatpush1.msra.mxu0 %v234
    %800 = vmatprep.subr.mxu0 0.0
    %801 = vmatpush1.msra.mxu0 %v235
    %802 = vmatprep.subr.mxu0 0.0
    %803 = vmatpush1.msra.mxu0 %v236
    %804 = vmatprep.subr.mxu0 0.0
    %805 = vmatpush1.msra.mxu0 %v237
    %806 = vmatprep.subr.mxu0 0.0
    %807 = vmatpush1.msra.mxu0 %v238
    %808 = vmatprep.subr.mxu0 0.0
    %809 = vmatpush1.msra.mxu0 %v239
    %810 = vmatprep.subr.mxu0 0.0
    %811 = vmatpush1.msra.mxu0 %v240
    %812 = vmatprep.subr.mxu0 0.0
    %813 = vmatpush1.msra.mxu0 %v241
    %814 = vmatprep.subr.mxu0 0.0
    %815 = vmatpush1.msra.mxu0 %v242
    %816 = vmatprep.subr.mxu0 0.0
    %817 = vmatpush1.msra.mxu0 %v243
    %818 = vmatprep.subr.mxu0 0.0
    %819 = vmatpush1.msra.mxu0 %v244
    %820 = vmatprep.subr.mxu0 0.0
    %821 = vmatpush1.msra.mxu0 %v245
    %822 = vmatprep.subr.mxu0 0.0
    %823 = vmatpush1.msra.mxu0 %v246
    %824 = vmatprep.subr.mxu0 0.0
    %825 = vmatpush1.msra.mxu0 %v247
    %826 = vmatprep.subr.mxu0 0.0
    %827 = vmatpush1.msra.mxu0 %v248
    %828 = vmatprep.subr.mxu0 0.0
    %829 = vmatpush1.msra.mxu0 %v249
    %830 = vmatprep.subr.mxu0 0.0
    %831 = vmatpush1.msra.mxu0 %v250
    %832 = vmatprep.mubr.f32.mxu0 %v385
    %833 = vmatmul.mubr.f32.gmra.mrb[0].mxu0 %v384
    %v834 = vpop.f32.mrb[0].mxu0
    %v835 = vadd.f32 %v765, %v834
    %v836 = vpop.f32.mrb[0].mxu0
    %837 = vdwg.mxu0
    %838 = vmatprep.subr.mxu0 0.0
    %839 = vmatpush1.msra.mxu0 %v251
    %840 = vmatprep.subr.mxu0 0.0
    %841 = vmatpush1.msra.mxu0 %v252
    %842 = vmatprep.subr.mxu0 0.0
    %843 = vmatpush1.msra.mxu0 %v253
    %844 = vmatprep.subr.mxu0 0.0
    %845 = vmatpush1.msra.mxu0 %v254
    %846 = vmatprep.subr.mxu0 0.0
    %847 = vmatpush1.msra.mxu0 0.0
    %848 = vmatprep.subr.mxu0 0.0
    %849 = vmatpush1.msra.mxu0 0.0
    %850 = vmatprep.subr.mxu0 0.0
    %851 = vmatpush1.msra.mxu0 0.0
    %852 = vmatprep.subr.mxu0 0.0
    %853 = vmatpush1.msra.mxu0 0.0
    %854 = vmatprep.subr.mxu0 0.0
    %855 = vmatpush1.msra.mxu0 0.0
    %856 = vmatprep.subr.mxu0 0.0
    %857 = vmatpush1.msra.mxu0 0.0
    %858 = vmatprep.subr.mxu0 0.0
    %859 = vmatpush1.msra.mxu0 0.0
    %860 = vmatprep.subr.mxu0 0.0
    %861 = vmatpush1.msra.mxu0 0.0
    %862 = vmatprep.subr.mxu0 0.0
    %863 = vmatpush1.msra.mxu0 0.0
    %864 = vmatprep.subr.mxu0 0.0
    %865 = vmatpush1.msra.mxu0 0.0
    %866 = vmatprep.subr.mxu0 0.0
    %867 = vmatpush1.msra.mxu0 0.0
    %868 = vmatprep.subr.mxu0 0.0
    %869 = vmatpush1.msra.mxu0 0.0
    %870 = vmatprep.subr.mxu0 0.0
    %871 = vmatpush1.msra.mxu0 0.0
    %872 = vmatprep.subr.mxu0 0.0
    %873 = vmatpush1.msra.mxu0 0.0
    %874 = vmatprep.subr.mxu0 0.0
    %875 = vmatpush1.msra.mxu0 0.0
    %876 = vmatprep.subr.mxu0 0.0
    %877 = vmatpush1.msra.mxu0 0.0
    %878 = vmatprep.subr.mxu0 0.0
    %879 = vmatpush1.msra.mxu0 0.0
    %880 = vmatprep.subr.mxu0 0.0
    %881 = vmatpush1.msra.mxu0 0.0
    %882 = vmatprep.subr.mxu0 0.0
    %883 = vmatpush1.msra.mxu0 0.0
    %884 = vmatprep.subr.mxu0 0.0
    %885 = vmatpush1.msra.mxu0 0.0
    %886 = vmatprep.subr.mxu0 0.0
    %887 = vmatpush1.msra.mxu0 0.0
    %888 = vmatprep.subr.mxu0 0.0
    %889 = vmatpush1.msra.mxu0 0.0
    %890 = vmatprep.subr.mxu0 0.0
    %891 = vmatpush1.msra.mxu0 0.0
    %892 = vmatprep.subr.mxu0 0.0
    %893 = vmatpush1.msra.mxu0 0.0
    %894 = vmatprep.subr.mxu0 0.0
    %895 = vmatpush1.msra.mxu0 0.0
    %896 = vmatprep.subr.mxu0 0.0
    %897 = vmatpush1.msra.mxu0 0.0
    %898 = vmatprep.subr.mxu0 0.0
    %899 = vmatpush1.msra.mxu0 0.0
    %900 = vmatprep.subr.mxu0 0.0
    %901 = vmatpush1.msra.mxu0 0.0
    %902 = vmatprep.mubr.f32.mxu0 0.0
    %903 = vmatmul.mubr.f32.gmra.mrb[0].mxu0 %v416
    %v904 = vpop.f32.mrb[0].mxu0
    %v905 = vadd.f32 %v835, %v904
    %v906 = vpop.f32.mrb[0].mxu0
    %907 = vdwg.mxu0
    %908 = vst [vmem:[#allocation7] sm:$0xff] %v905
    // Predicated region
    $region22: #{tpu_custom_call.1} parent=1 // pred_check
      _
    $region23: #{tpu_custom_call.1} parent=1 // pred_check_branch
      %910 = sbr.rel (0) target = $region25
    $region24: #{tpu_custom_call.1} parent=1 // pred_region
      %s912 = ssub.s32 128, 32
      %913 = vsyncadd [#allocation4], %s912
      %s914 = sshll.u32 [#allocation7], 4
      %s915 = int_to_ptr.vmem [resolvable:$true] %s914
      %920 = dma.vmem_to_hbm [thread:$0]  %s915, 32, %s3, [#allocation4], 32, 32, 2
    $region25: #{tpu_custom_call.1} parent=1 // pred_fallthru
      _
    // Predicated region
    $region26: #{tpu_custom_call.1} parent=1 // pred_check
      _
    $region27: #{tpu_custom_call.1} parent=1 // pred_check_branch
      %922 = sbr.rel (0) target = $region29
    $region28: #{tpu_custom_call.1} parent=1 // pred_region
      %923 = dma.done [#allocation4], 128
    $region29: #{tpu_custom_call.1} parent=1 // pred_fallthru
      _
    %924 = vsyncpa [#allocation3], 1
    %925 = vsyncpa [#allocation6], 1
    %926 = vsyncpa [#allocation4], 1

</llo_original>
